<compile_context>
chip_gen: v5e
topology: v5e:2x2
jax: 0.10.0
libtpu: 0.0.40
codegen_flags: <defaults>
</compile_context>

<pallas_src>
import jax
import jax.numpy as jnp
import numpy as np
from jax.experimental import pallas as pl
from jax.experimental.pallas import tpu as pltpu


def _round_up(x, m):
    return ((x + m - 1) // m) * m


def _conv3d_mm_kernel(w_ref, p_ref, o_ref):
    """One (Coutp, tm) output tile, accumulated over the K grid axis.

    w_ref: (Coutp, tk) compute_dtype   p_ref: (tk, tm) compute_dtype
    o_ref: (Coutp, tm) float32 -- same block index across the K axis, so it
           stays VMEM-resident and acts as the f32 accumulator.
    """
    @pl.when(pl.program_id(1) == 0)
    def _():
        o_ref[...] = jnp.zeros_like(o_ref)

    o_ref[...] += jnp.dot(w_ref[...], p_ref[...],
                          preferred_element_type=jnp.float32)


def pallas_conv3d(x_ncdhw, weight_oidhw, bias, *, stride=1, padding=0,
                  compute_dtype=jnp.bfloat16,
                  vmem_budget_bytes=12 * 2**20,
                  max_single_k=2048, k_tile=512,
                  target_m_steps=8, tm_cap=4096):
    """Conv3d forward matching torch.nn.Conv3d semantics.

    x_ncdhw:      (N, Cin, D, H, W)        float32
    weight_oidhw: (Cout, Cin, kD, kH, kW)  float32
    bias:         (Cout,) or None
    returns:      (N, Cout, D_out, H_out, W_out) float32
    """
    N, Cin, D, H, W = x_ncdhw.shape
    Cout, Cin_w, kD, kH, kW = weight_oidhw.shape
    assert Cin == Cin_w
    s, p = int(stride), int(padding)

    D_out = (D + 2 * p - kD) // s + 1
    H_out = (H + 2 * p - kH) // s + 1
    W_out = (W + 2 * p - kW) // s + 1

    itemsize = jnp.dtype(compute_dtype).itemsize
    sub = 8 * max(1, 4 // itemsize)       # packed-sublane multiple: 8 f32, 16 bf16

    # --------------------------- tiling choices ------------------------------
    K = kD * kH * kW * Cin
    K_aug = K + (1 if bias is not None else 0)      # +1 row: folded bias
    Coutp = _round_up(Cout, sub)

    if _round_up(K_aug, sub) <= max_single_k:
        tk = _round_up(K_aug, sub)                  # whole K per step
    else:
        tk = _round_up(max(k_tile, 128), 128)       # K reduction grid axis
    K_pad = _round_up(K_aug, tk)
    grid_k = K_pad // tk

    M = N * D_out * H_out * W_out
    # tm from the per-step VMEM footprint (double-buffered blocks), capped so
    # the parallel M axis keeps ~target_m_steps steps for megacore sharding.
    per_m = 2 * tk * itemsize + 2 * Coutp * 4       # patches + f32 out blocks
    fixed = 2 * Coutp * tk * itemsize               # weight block
    tm_budget = max(128, (vmem_budget_bytes - fixed) // max(per_m, 1))
    tm_steps = max(128, _round_up((M + target_m_steps - 1) // target_m_steps, 128))
    tm = max(128, (min(tm_budget, tm_cap, tm_steps) // 128) * 128)
    M_pad = _round_up(M, tm)
    grid_m = M_pad // tm

    # -------------- wrapper glue (plain JAX): layout + im2col (K, M) ---------
    # Cast to the MXU compute dtype FIRST so all im2col traffic is narrow.
    x = x_ncdhw.astype(compute_dtype)
    x = jnp.transpose(x, (1, 0, 2, 3, 4))           # (Cin, N, D, H, W)
    if p:
        x = jnp.pad(x, ((0, 0), (0, 0), (p, p), (p, p), (p, p)))

    cols = []
    for kd in range(kD):
        for kh in range(kH):
            for kw in range(kW):
                cols.append(
                    x[:, :,
                      kd: kd + (D_out - 1) * s + 1: s,
                      kh: kh + (H_out - 1) * s + 1: s,
                      kw: kw + (W_out - 1) * s + 1: s].reshape(Cin, M))
    if bias is not None:
        cols.append(jnp.ones((1, M), compute_dtype))        # folded-bias row
    if K_pad > K_aug:
        cols.append(jnp.zeros((K_pad - K_aug, M), compute_dtype))
    patches = jnp.concatenate(cols, axis=0)                  # (K_pad, M)
    if M_pad > M:
        patches = jnp.pad(patches, ((0, 0), (0, M_pad - M)))

    # Weights -> (Cout, K) in matching (kd, kh, kw, cin) order; fold bias col.
    w_mat = jnp.transpose(weight_oidhw, (0, 2, 3, 4, 1)).reshape(Cout, K)
    w_mat = w_mat.astype(compute_dtype)
    if bias is not None:
        w_mat = jnp.concatenate(
            [w_mat, bias.reshape(Cout, 1).astype(compute_dtype)], axis=1)
    w_mat = jnp.pad(w_mat, ((0, Coutp - Cout), (0, K_pad - K_aug)))

    # ------------------------------- pallas_call ------------------------------
    est_step_bytes = fixed + per_m * tm
    vmem_limit = int(min(40 * 2**20, max(32 * 2**20, 2 * est_step_bytes)))

    cost = pl.CostEstimate(
        flops=2 * M * K * Cout,                      # real (unpadded) work
        transcendentals=0,
        bytes_accessed=int(K_pad * M_pad * itemsize
                           + Coutp * K_pad * itemsize
                           + Coutp * M_pad * 4),
    )

    out = pl.pallas_call(
        _conv3d_mm_kernel,
        out_shape=jax.ShapeDtypeStruct((Coutp, M_pad), jnp.float32),
        grid=(grid_m, grid_k),
        in_specs=[
            pl.BlockSpec((Coutp, tk), lambda i, k: (0, k)),   # weights
            pl.BlockSpec((tk, tm), lambda i, k: (k, i)),      # im2col patches
        ],
        out_specs=pl.BlockSpec((Coutp, tm), lambda i, k: (0, i)),
        compiler_params=pltpu.CompilerParams(
            dimension_semantics=("parallel", "arbitrary"),
            vmem_limit_bytes=vmem_limit,
        ),
        cost_estimate=cost,
    )(w_mat, patches)

    out = out[:Cout, :M].reshape(Cout, N, D_out, H_out, W_out)
    return jnp.transpose(out, (1, 0, 2, 3, 4))       # NCDHW, matches torch


def _ref_conv3d(x, weight, bias, stride, padding):
    out = jax.lax.conv_general_dilated(
        x, weight,
        window_strides=(stride,) * 3,
        padding=[(padding, padding)] * 3,
        dimension_numbers=("NCDHW", "OIDHW", "NCDHW"),
    )
    if bias is not None:
        out = out + bias.reshape(1, -1, 1, 1, 1)
    return out


if __name__ == "__main__":
    key = jax.random.PRNGKey(0)
    kx, kw_, kb, kx2, kw2, kx3, kw3, kb3 = jax.random.split(key, 8)

    # ---- config 1: matches PyTorchConv3d(4, 8, 3, stride=1, padding=1) ----
    N, Cin, D, H, W = 2, 4, 16, 16, 16
    Cout, k, stride, padding = 8, 3, 1, 1

    x = jax.random.normal(kx, (N, Cin, D, H, W), dtype=jnp.float32)
    fan_in = Cin * k * k * k
    bound = 1.0 / np.sqrt(fan_in)
    weight = jax.random.uniform(kw_, (Cout, Cin, k, k, k),
                                minval=-bound, maxval=bound, dtype=jnp.float32)
    bias = jax.random.uniform(kb, (Cout,),
                              minval=-bound, maxval=bound, dtype=jnp.float32)

    ref = jax.block_until_ready(_ref_conv3d(x, weight, bias, stride, padding))

    # f32 compute path: tight semantic check.
    out_f32 = jax.block_until_ready(
        pallas_conv3d(x, weight, bias, stride=stride, padding=padding,
                      compute_dtype=jnp.float32))
    np.testing.assert_allclose(np.asarray(out_f32), np.asarray(ref),
                               rtol=1e-4, atol=1e-4)

    # Default bf16-MXU / f32-accumulate production path.
    out_bf16 = jax.block_until_ready(
        pallas_conv3d(x, weight, bias, stride=stride, padding=padding))
    np.testing.assert_allclose(np.asarray(out_bf16), np.asarray(ref),
                               rtol=5e-2, atol=5e-2)

    # ---- config 2: stride=2, padding=0, bias=None, odd channel counts ----
    x2 = jax.random.normal(kx2, (1, 3, 9, 9, 9), dtype=jnp.float32)
    w2 = jax.random.uniform(kw2, (5, 3, 3, 3, 3),
                            minval=-0.2, maxval=0.2, dtype=jnp.float32)
    ref2 = jax.block_until_ready(_ref_conv3d(x2, w2, None, 2, 0))
    out2 = jax.block_until_ready(
        pallas_conv3d(x2, w2, None, stride=2, padding=0,
                      compute_dtype=jnp.float32))
    np.testing.assert_allclose(np.asarray(out2), np.asarray(ref2),
                               rtol=1e-4, atol=1e-4)

    # ---- config 3: force the K-reduction grid axis (grid_k > 1) ----
    x3 = jax.random.normal(kx3, (1, 8, 8, 8, 8), dtype=jnp.float32)
    fan3 = 8 * 27
    b3 = 1.0 / np.sqrt(fan3)
    w3 = jax.random.uniform(kw3, (8, 8, 3, 3, 3),
                            minval=-b3, maxval=b3, dtype=jnp.float32)
    bias3 = jax.random.uniform(kb3, (8,),
                               minval=-b3, maxval=b3, dtype=jnp.float32)
    ref3 = jax.block_until_ready(_ref_conv3d(x3, w3, bias3, 1, 1))
    out3 = jax.block_until_ready(
        pallas_conv3d(x3, w3, bias3, stride=1, padding=1,
                      compute_dtype=jnp.float32,
                      max_single_k=64, k_tile=128))   # K=217 -> 2 K-steps
    np.testing.assert_allclose(np.asarray(out3), np.asarray(ref3),
                               rtol=1e-4, atol=1e-4)

    print("KERNEL_OK")
</pallas_src>

<mosaic_0001>
module attributes {stable_mosaic.version = 11 : i64} {
  func.func @_conv3d_mm_kernel(%arg0: i32, %arg1: i32, %arg2: memref<8x112xf32, #tpu.memory_space<vmem>>, %arg3: memref<112x1024xf32, #tpu.memory_space<vmem>>, %arg4: memref<8x1024xf32, #tpu.memory_space<vmem>>) attributes {dimension_semantics = [#tpu.dimension_semantics<parallel>, #tpu.dimension_semantics<arbitrary>], iteration_bounds = array<i64: 8, 1>, scalar_prefetch = 0 : i64, scratch_operands = 0 : i64, tpu.core_type = #tpu.core_type<tc>, window_params = [{transform_indices = @transform_0, window_bounds = array<i64: 8, 112>}, {transform_indices = @transform_1, window_bounds = array<i64: 112, 1024>}, {transform_indices = @transform_2, window_bounds = array<i64: 8, 1024>}]} {
    %c0_i32 = arith.constant 0 : i32
    %0 = arith.cmpi eq, %arg1, %c0_i32 : i32
    %1 = arith.extui %0 : i1 to i32
    %c0_i32_0 = arith.constant 0 : i32
    %2 = arith.cmpi ne, %1, %c0_i32_0 : i32
    scf.if %2 {
      %cst_8 = arith.constant 0.000000e+00 : f32
      %9 = vector.broadcast %cst_8 : f32 to vector<8x1024xf32>
      %c0_9 = arith.constant 0 : index
      %c0_10 = arith.constant 0 : index
      %10 = vector.load %arg4[%c0_9, %c0_10] : memref<8x1024xf32, #tpu.memory_space<vmem>>, vector<8x1024xf32>
      tpu.vector_store %arg4[%c0_9, %c0_10], %9 {strides = array<i32>} : memref<8x1024xf32, #tpu.memory_space<vmem>>, vector<8x1024xf32>,
    } else {
    }
    %c0 = arith.constant 0 : index
    %c0_1 = arith.constant 0 : index
    %3 = vector.load %arg4[%c0, %c0_1] : memref<8x1024xf32, #tpu.memory_space<vmem>>, vector<8x1024xf32>
    %c0_2 = arith.constant 0 : index
    %c0_3 = arith.constant 0 : index
    %4 = vector.load %arg2[%c0_2, %c0_3] : memref<8x112xf32, #tpu.memory_space<vmem>>, vector<8x112xf32>
    %c0_4 = arith.constant 0 : index
    %c0_5 = arith.constant 0 : index
    %5 = vector.load %arg3[%c0_4, %c0_5] : memref<112x1024xf32, #tpu.memory_space<vmem>>, vector<112x1024xf32>
    %cst = arith.constant dense<0.000000e+00> : vector<8x1024xf32>
    %6 = tpu.matmul %4, %5, %cst {dimension_numbers = #tpu.dot_dimension_numbers<[1], [0], [0], [1], [0, 0, 1, 1], [], []>} : vector<8x112xf32>, vector<112x1024xf32>, vector<8x1024xf32> -> vector<8x1024xf32>
    %7 = arith.addf %3, %6 : vector<8x1024xf32>
    %c0_6 = arith.constant 0 : index
    %c0_7 = arith.constant 0 : index
    %8 = vector.load %arg4[%c0_6, %c0_7] : memref<8x1024xf32, #tpu.memory_space<vmem>>, vector<8x1024xf32>
    tpu.vector_store %arg4[%c0_6, %c0_7], %7 {strides = array<i32>} : memref<8x1024xf32, #tpu.memory_space<vmem>>, vector<8x1024xf32>,
    return
  }
  func.func @transform_0(%arg0: i32, %arg1: i32) -> (i32, i32) {
    %c0_i32 = arith.constant 0 : i32
    %c0_i32_0 = arith.constant 0 : i32
    return %c0_i32, %arg1 : i32, i32
  }
  func.func @transform_1(%arg0: i32, %arg1: i32) -> (i32, i32) {
    %c0_i32 = arith.constant 0 : i32
    return %arg1, %arg0 : i32, i32
  }
  func.func @transform_2(%arg0: i32, %arg1: i32) -> (i32, i32) {
    %c0_i32 = arith.constant 0 : i32
    %c0_i32_0 = arith.constant 0 : i32
    return %c0_i32, %arg0 : i32, i32
  }
}

</mosaic_0001>

<llo_original>
// kernel: tpu_custom_call.1
$region0: #{tpu_custom_call.1}
  #allocation0 [shape = 'u32[]', space=smem, size = 0x4, offset = 0x4, fixed_abs, tag = 'smem constant byte address 0x4 - core index']
  #allocation1 [shape = 'u32[72,128]{1,0:T(1,128)}', space=vmem, size = 0x9000, scoped, tag = 'internal scratch']
  %s0 = inlined_call_operand.hbm [shape: f32[8,112], index: 0, kind: input, shape index: {}]
  %s1 = inlined_call_operand.hbm [shape: f32[112,8192], index: 1, kind: input, shape index: {}]
  %s2 = inlined_call_operand.hbm [shape: f32[8,8192], index: 2, kind: output, shape index: {}]
  %s3 = sld [smem:[#allocation0]]
  $region53: #{tpu_custom_call.1} parent=0
    _
  %s5 = ssub.s32 1, %s3
  %s6 = scalar_select 0, %s5, %s3
  $region1: #{tpu_custom_call.1} parent=0
    #allocation2 [shape = 'u8[4096]{0}', space=vmem, size = 0x1000, scoped, tag = 'input window, operand 0, single buffered']
    #allocation3 [shape = 's32[2]{0}', space=sflag, size = 0x8, scoped, tag = 'scoped memory for tpu_custom_call.1']
    #allocation4 [shape = 's32[2]{0}', space=sflag, size = 0x8, scoped, tag = 'scoped memory for tpu_custom_call.1']
    #allocation5 [shape = 'u8[917504]{0}', space=vmem, size = 0xe0000, scoped, tag = 'input window, operand 1']
    #allocation6 [shape = 's32[2]{0}', space=sflag, size = 0x8, scoped, tag = 'scoped memory for tpu_custom_call.1']
    #allocation7 [shape = 'u8[65536]{0}', space=vmem, size = 0x10000, scoped, tag = 'output window, operand 0']
    %7 = vsyncpa [#allocation3], 0
    %8 = vsyncpa [#allocation6], 0
    %s9 = scalar_lea.sflag [#allocation6], 1
    %10 = vsyncpa %s9, 0
    %11 = vsyncpa [#allocation4], 0
    %s12 = scalar_lea.sflag [#allocation4], 1
    %13 = vsyncpa %s12, 0
    loop: start=0, step=1, limit=10
    $region2: #{tpu_custom_call.1} parent=1 // loop_pre_header
      _
    $region3: #{tpu_custom_call.1} parent=1 // loop_header
      %s15 = sphi 0, %s19
      %p16 = scmp.ge.s32.totalorder %s15, 10
      %s22 = sphi 0, %s34
      %s23 = sphi 0, %s30
      %s24 = sphi 0, %s22
      %s25 = sphi 0, %s23
      %s26 = sphi 0, %s24
      %s27 = sphi 0, %s25
      %s37 = sphi 0, %s39
      %s40 = sphi 0, %s37
      %s41 = sphi 0, %s40
      %s57 = sphi 0, %s41
      %s65 = sphi 0, %s67
      %s68 = sphi 0, %s65
      %s69 = sphi 0, %s68
      %s85 = sphi 0, %s69
      %s91 = sphi 0, %s93
      %s94 = sphi 0, %s91
      %s95 = sphi 0, %s94
      %s111 = sphi 0, %s95
    $region4: #{tpu_custom_call.1} parent=1 // loop_header_branch
      %18 = sbr.rel (%p16) target = $region8
    $region5: #{tpu_custom_call.1} parent=1 // loop_body
      %s20 = ssub.s32 %s15, 1
      %s21 = ssub.s32 %s15, 2
      %s28 = sadd.s32 1, %s23
      %p29 = scmp.ge.s32.totalorder %s28, 1
      %s30 = scalar_select %p29, 0, %s28
      %s31 = sadd.s32 1, %s22
      %s32 = scalar_select %p29, %s31, %s22
      %p33 = scmp.ge.s32.totalorder %s32, 8
      %s34 = scalar_select %p33, 0, %s32
      %s35 = ssub.s32 %s23, %s30
      %p36 = scmp.eq.s32.totalorder %s35, 0
      %s38 = sadd.s32 %s37, 1
      %s39 = scalar_select %p36, %s37, %s38
      %p42 = pneg %p36
      %p43 = scmp.eq.s32.totalorder %s15, 7
      %p44 = por %p42, %p43
      %p45 = scmp.ne.s32.totalorder %s37, %s40
      %p46 = scmp.eq.s32.totalorder %s15, 0
      %p47 = por %p45, %p46
      %p48 = scmp.ne.s32.totalorder %s37, %s40
      %p49 = scmp.eq.s32.totalorder %s20, 7
      %p50 = por %p48, %p49
      %p51 = scmp.ne.s32.totalorder %s40, %s41
      %p52 = scmp.eq.s32.totalorder %s20, 0
      %p53 = por %p51, %p52
      %p54 = scmp.ne.s32.totalorder %s40, %s41
      %p55 = scmp.eq.s32.totalorder %s21, 7
      %p56 = por %p54, %p55
      %p58 = scmp.ne.s32.totalorder %s41, %s57
      %p59 = scmp.eq.s32.totalorder %s21, 0
      %p60 = por %p58, %p59
      %s61 = ssub.s32 %s23, %s30
      %s62 = ssub.s32 %s22, %s34
      %s63 = sor.u32 %s61, %s62
      %p64 = scmp.eq.s32.totalorder %s63, 0
      %s66 = sadd.s32 %s65, 1
      %s67 = scalar_select %p64, %s65, %s66
      %p70 = pneg %p64
      %p71 = scmp.eq.s32.totalorder %s15, 7
      %p72 = por %p70, %p71
      %p73 = scmp.ne.s32.totalorder %s65, %s68
      %p74 = scmp.eq.s32.totalorder %s15, 0
      %p75 = por %p73, %p74
      %p76 = scmp.ne.s32.totalorder %s65, %s68
      %p77 = scmp.eq.s32.totalorder %s20, 7
      %p78 = por %p76, %p77
      %p79 = scmp.ne.s32.totalorder %s68, %s69
      %p80 = scmp.eq.s32.totalorder %s20, 0
      %p81 = por %p79, %p80
      %p82 = scmp.ne.s32.totalorder %s68, %s69
      %p83 = scmp.eq.s32.totalorder %s21, 7
      %p84 = por %p82, %p83
      %p86 = scmp.ne.s32.totalorder %s69, %s85
      %p87 = scmp.eq.s32.totalorder %s21, 0
      %p88 = por %p86, %p87
      %s89 = ssub.s32 %s22, %s34
      %p90 = scmp.eq.s32.totalorder %s89, 0
      %s92 = sadd.s32 %s91, 1
      %s93 = scalar_select %p90, %s91, %s92
      %p96 = pneg %p90
      %p97 = scmp.eq.s32.totalorder %s15, 7
      %p98 = por %p96, %p97
      %p99 = scmp.ne.s32.totalorder %s91, %s94
      %p100 = scmp.eq.s32.totalorder %s15, 0
      %p101 = por %p99, %p100
      %p102 = scmp.ne.s32.totalorder %s91, %s94
      %p103 = scmp.eq.s32.totalorder %s20, 7
      %p104 = por %p102, %p103
      %p105 = scmp.ne.s32.totalorder %s94, %s95
      %p106 = scmp.eq.s32.totalorder %s20, 0
      %p107 = por %p105, %p106
      %p108 = scmp.ne.s32.totalorder %s94, %s95
      %p109 = scmp.eq.s32.totalorder %s21, 7
      %p110 = por %p108, %p109
      %p112 = scmp.ne.s32.totalorder %s95, %s111
      %p113 = scmp.eq.s32.totalorder %s21, 0
      %p114 = por %p112, %p113
      %p115 = scmp.le.s32.totalorder 1, %s15
      %p116 = scmp.lt.s32.totalorder %s15, 9
      %p117 = pnand %p115, %p116
      %p118 = pneg %p117
      // Predicated region
      $region9: #{tpu_custom_call.1} parent=5 // pred_check
        _
      $region10: #{tpu_custom_call.1} parent=5 // pred_check_branch
        %120 = sbr.rel (%p117) target = $region12
      $region11: #{tpu_custom_call.1} parent=5 // pred_region
        %s121 = ssub.s32 %s15, 1
        // Predicated region
        $region13: #{tpu_custom_call.1} parent=11 // pred_check
          %p122 = pneg %p53
        $region14: #{tpu_custom_call.1} parent=11 // pred_check_branch
          %124 = sbr.rel (%p122) target = $region16
        $region15: #{tpu_custom_call.1} parent=11 // pred_region
          %126 = vsyncadd [#allocation3], 0
          %s127 = smul.addr %s25, 8
          %s128 = scalar_lea.hbm %s0, %s127
          %s130 = sshll.u32 %s128, 4
          %s131 = int_to_ptr.hbm [resolvable:$true] %s130
          %s132 = sshll.u32 [#allocation2], 4
          %s133 = int_to_ptr.vmem [resolvable:$true] %s132
          %135 = dma.hbm_to_vmem [thread:$0]  %s131, 128, %s133, [#allocation3]
        $region16: #{tpu_custom_call.1} parent=11 // pred_fallthru
          _
      $region12: #{tpu_custom_call.1} parent=5 // pred_fallthru
        _
      %p136 = scmp.lt.s32.totalorder %s15, 8
      // Predicated region
      $region17: #{tpu_custom_call.1} parent=5 // pred_check
        %p137 = pneg %p136
      $region18: #{tpu_custom_call.1} parent=5 // pred_check_branch
        %139 = sbr.rel (%p137) target = $region20
      $region19: #{tpu_custom_call.1} parent=5 // pred_region
        // Predicated region
        $region21: #{tpu_custom_call.1} parent=19 // pred_check
          %p140 = pneg %p75
        $region22: #{tpu_custom_call.1} parent=19 // pred_check_branch
          %142 = sbr.rel (%p140) target = $region24
        $region23: #{tpu_custom_call.1} parent=19 // pred_region
          %s143 = sand.u32 %s65, 1
          %s144 = scalar_lea.sflag [#allocation6], %s143
          %s145 = sand.u32 %s65, 1
          %s146 = smul.addr %s145, 896
          %s147 = scalar_lea.vmem [#allocation5], %s146
          %s148 = smul.u32 14, %s23
          %s149 = smul.u32 8, %s22
          %151 = vsyncadd %s144, 0
          %s152 = smul.addr %s148, 64
          %s153 = sadd.s32 %s149, %s152
          %s154 = smul.addr %s153, 8
          %s155 = scalar_lea.hbm %s1, %s154
          %s156 = sshll.u32 %s155, 4
          %s157 = int_to_ptr.hbm [resolvable:$true] %s156
          %s158 = sshll.u32 %s147, 4
          %s159 = int_to_ptr.vmem [resolvable:$true] %s158
          %164 = dma.hbm_to_vmem [thread:$0]  %s157, 14336, %s159, %s144, 8192, 1024, 64
        $region24: #{tpu_custom_call.1} parent=19 // pred_fallthru
          _
      $region20: #{tpu_custom_call.1} parent=5 // pred_fallthru
        _
      %p165 = scmp.le.s32.totalorder 1, %s15
      %p166 = scmp.lt.s32.totalorder %s15, 9
      %p167 = pnand %p165, %p166
      %p168 = pneg %p167
      // Predicated region
      $region25: #{tpu_custom_call.1} parent=5 // pred_check
        _
      $region26: #{tpu_custom_call.1} parent=5 // pred_check_branch
        %170 = sbr.rel (%p167) target = $region28
      $region27: #{tpu_custom_call.1} parent=5 // pred_region
        %s171 = ssub.s32 %s15, 1
        // Predicated region
        $region29: #{tpu_custom_call.1} parent=27 // pred_check
          %p172 = pneg %p53
        $region30: #{tpu_custom_call.1} parent=27 // pred_check_branch
          %174 = sbr.rel (%p172) target = $region32
        $region31: #{tpu_custom_call.1} parent=27 // pred_region
          %176 = dma.done [#allocation3], 128
        $region32: #{tpu_custom_call.1} parent=27 // pred_fallthru
          _
        %s177 = sand.u32 %s68, 1
        %s178 = scalar_lea.sflag [#allocation6], %s177
        %s179 = sand.u32 %s68, 1
        %s180 = smul.addr %s179, 896
        %s181 = scalar_lea.vmem [#allocation5], %s180
        // Predicated region
        $region33: #{tpu_custom_call.1} parent=27 // pred_check
          %p182 = pneg %p81
        $region34: #{tpu_custom_call.1} parent=27 // pred_check_branch
          %184 = sbr.rel (%p182) target = $region36
        $region35: #{tpu_custom_call.1} parent=27 // pred_region
          %186 = dma.done %s178, 14336
        $region36: #{tpu_custom_call.1} parent=27 // pred_fallthru
          _
        %p187 = pneg %p53
        %p188 = pneg %p50
        %s189 = sand.u32 %s68, 1
        %s190 = scalar_lea.sflag [#allocation6], %s189
        %s191 = sand.u32 %s68, 1
        %s192 = smul.addr %s191, 896
        %s193 = scalar_lea.vmem [#allocation5], %s192
        %p194 = pneg %p81
        %p195 = pneg %p78
        %p196 = pneg %p107
        %p197 = pneg %p104
        %s198 = sand.u32 %s94, 1
        %s199 = scalar_lea.sflag [#allocation4], %s198
        %s200 = sand.u32 %s94, 1
        %s201 = smul.addr %s200, 64
        %s202 = scalar_lea.vmem [#allocation7], %s201
        %s203 = smul.u32 14, %s25
        %s204 = smul.u32 8, %s24
        %s205 = smul.u32 8, %s24
        %p206 = scmp.eq.s32.totalorder %s25, 0
        // Predicated region
        $region37: #{tpu_custom_call.1} parent=27 // pred_check
          %p207 = pneg %p206
        $region38: #{tpu_custom_call.1} parent=27 // pred_check_branch
          %209 = sbr.rel (%p207) target = $region40
        $region39: #{tpu_custom_call.1} parent=27 // pred_region
          %210 = vst [vmem:[%s202] sm:$0xff] 0.0
          %211 = vst [vmem:[%s202 + $0x8] sm:$0xff] 0.0
          %212 = vst [vmem:[%s202 + $0x10] sm:$0xff] 0.0
          %213 = vst [vmem:[%s202 + $0x18] sm:$0xff] 0.0
          %214 = vst [vmem:[%s202 + $0x20] sm:$0xff] 0.0
          %215 = vst [vmem:[%s202 + $0x28] sm:$0xff] 0.0
          %216 = vst [vmem:[%s202 + $0x30] sm:$0xff] 0.0
          %217 = vst [vmem:[%s202 + $0x38] sm:$0xff] 0.0
        $region40: #{tpu_custom_call.1} parent=27 // pred_fallthru
          _
        %v218 = vld [vmem:[%s202] sm:$0xff]
        %v219 = vld [vmem:[%s202 + $0x8] sm:$0xff]
        %v220 = vld [vmem:[%s202 + $0x10] sm:$0xff]
        %v221 = vld [vmem:[%s202 + $0x18] sm:$0xff]
        %v222 = vld [vmem:[%s202 + $0x20] sm:$0xff]
        %v223 = vld [vmem:[%s202 + $0x28] sm:$0xff]
        %v224 = vld [vmem:[%s202 + $0x30] sm:$0xff]
        %v225 = vld [vmem:[%s202 + $0x38] sm:$0xff]
        %v226 = vld [vmem:[#allocation2] sm:$0xff]
        %v227 = vld [vmem:[%s181] sm:$0xff]
        %v228 = vld [vmem:[%s181 + $0x8] sm:$0xff]
        %v229 = vld [vmem:[%s181 + $0x10] sm:$0xff]
        %v230 = vld [vmem:[%s181 + $0x18] sm:$0xff]
        %v231 = vld [vmem:[%s181 + $0x20] sm:$0xff]
        %v232 = vld [vmem:[%s181 + $0x28] sm:$0xff]
        %v233 = vld [vmem:[%s181 + $0x30] sm:$0xff]
        %v234 = vld [vmem:[%s181 + $0x38] sm:$0xff]
        %v235 = vld [vmem:[%s181 + $0x40] sm:$0xff]
        %v236 = vld [vmem:[%s181 + $0x48] sm:$0xff]
        %v237 = vld [vmem:[%s181 + $0x50] sm:$0xff]
        %v238 = vld [vmem:[%s181 + $0x58] sm:$0xff]
        %v239 = vld [vmem:[%s181 + $0x60] sm:$0xff]
        %v240 = vld [vmem:[%s181 + $0x68] sm:$0xff]
        %v241 = vld [vmem:[%s181 + $0x70] sm:$0xff]
        %v242 = vld [vmem:[%s181 + $0x78] sm:$0xff]
        %v243 = vld [vmem:[%s181 + $0x80] sm:$0xff]
        %v244 = vld [vmem:[%s181 + $0x88] sm:$0xff]
        %v245 = vld [vmem:[%s181 + $0x90] sm:$0xff]
        %v246 = vld [vmem:[%s181 + $0x98] sm:$0xff]
        %v247 = vld [vmem:[%s181 + $0xa0] sm:$0xff]
        %v248 = vld [vmem:[%s181 + $0xa8] sm:$0xff]
        %v249 = vld [vmem:[%s181 + $0xb0] sm:$0xff]
        %v250 = vld [vmem:[%s181 + $0xb8] sm:$0xff]
        %v251 = vld [vmem:[%s181 + $0xc0] sm:$0xff]
        %v252 = vld [vmem:[%s181 + $0xc8] sm:$0xff]
        %v253 = vld [vmem:[%s181 + $0xd0] sm:$0xff]
        %v254 = vld [vmem:[%s181 + $0xd8] sm:$0xff]
        %v255 = vld [vmem:[%s181 + $0xe0] sm:$0xff]
        %v256 = vld [vmem:[%s181 + $0xe8] sm:$0xff]
        %v257 = vld [vmem:[%s181 + $0xf0] sm:$0xff]
        %v258 = vld [vmem:[%s181 + $0xf8] sm:$0xff]
        %v259 = vld [vmem:[%s181 + $0x100] sm:$0xff]
        %v260 = vld [vmem:[%s181 + $0x108] sm:$0xff]
        %v261 = vld [vmem:[%s181 + $0x110] sm:$0xff]
        %v262 = vld [vmem:[%s181 + $0x118] sm:$0xff]
        %v263 = vld [vmem:[%s181 + $0x120] sm:$0xff]
        %v264 = vld [vmem:[%s181 + $0x128] sm:$0xff]
        %v265 = vld [vmem:[%s181 + $0x130] sm:$0xff]
        %v266 = vld [vmem:[%s181 + $0x138] sm:$0xff]
        %v267 = vld [vmem:[%s181 + $0x140] sm:$0xff]
        %v268 = vld [vmem:[%s181 + $0x148] sm:$0xff]
        %v269 = vld [vmem:[%s181 + $0x150] sm:$0xff]
        %v270 = vld [vmem:[%s181 + $0x158] sm:$0xff]
        %v271 = vld [vmem:[%s181 + $0x160] sm:$0xff]
        %v272 = vld [vmem:[%s181 + $0x168] sm:$0xff]
        %v273 = vld [vmem:[%s181 + $0x170] sm:$0xff]
        %v274 = vld [vmem:[%s181 + $0x178] sm:$0xff]
        %v275 = vld [vmem:[%s181 + $0x180] sm:$0xff]
        %v276 = vld [vmem:[%s181 + $0x188] sm:$0xff]
        %v277 = vld [vmem:[%s181 + $0x190] sm:$0xff]
        %v278 = vld [vmem:[%s181 + $0x198] sm:$0xff]
        %v279 = vld [vmem:[%s181 + $0x1a0] sm:$0xff]
        %v280 = vld [vmem:[%s181 + $0x1a8] sm:$0xff]
        %v281 = vld [vmem:[%s181 + $0x1b0] sm:$0xff]
        %v282 = vld [vmem:[%s181 + $0x1b8] sm:$0xff]
        %v283 = vld [vmem:[%s181 + $0x1c0] sm:$0xff]
        %v284 = vld [vmem:[%s181 + $0x1c8] sm:$0xff]
        %v285 = vld [vmem:[%s181 + $0x1d0] sm:$0xff]
        %v286 = vld [vmem:[%s181 + $0x1d8] sm:$0xff]
        %v287 = vld [vmem:[%s181 + $0x1e0] sm:$0xff]
        %v288 = vld [vmem:[%s181 + $0x1e8] sm:$0xff]
        %v289 = vld [vmem:[%s181 + $0x1f0] sm:$0xff]
        %v290 = vld [vmem:[%s181 + $0x1f8] sm:$0xff]
        %v291 = vld [vmem:[%s181 + $0x200] sm:$0xff]
        %v292 = vld [vmem:[%s181 + $0x208] sm:$0xff]
        %v293 = vld [vmem:[%s181 + $0x210] sm:$0xff]
        %v294 = vld [vmem:[%s181 + $0x218] sm:$0xff]
        %v295 = vld [vmem:[%s181 + $0x220] sm:$0xff]
        %v296 = vld [vmem:[%s181 + $0x228] sm:$0xff]
        %v297 = vld [vmem:[%s181 + $0x230] sm:$0xff]
        %v298 = vld [vmem:[%s181 + $0x238] sm:$0xff]
        %v299 = vld [vmem:[%s181 + $0x240] sm:$0xff]
        %v300 = vld [vmem:[%s181 + $0x248] sm:$0xff]
        %v301 = vld [vmem:[%s181 + $0x250] sm:$0xff]
        %v302 = vld [vmem:[%s181 + $0x258] sm:$0xff]
        %v303 = vld [vmem:[%s181 + $0x260] sm:$0xff]
        %v304 = vld [vmem:[%s181 + $0x268] sm:$0xff]
        %v305 = vld [vmem:[%s181 + $0x270] sm:$0xff]
        %v306 = vld [vmem:[%s181 + $0x278] sm:$0xff]
        %v307 = vld [vmem:[%s181 + $0x280] sm:$0xff]
        %v308 = vld [vmem:[%s181 + $0x288] sm:$0xff]
        %v309 = vld [vmem:[%s181 + $0x290] sm:$0xff]
        %v310 = vld [vmem:[%s181 + $0x298] sm:$0xff]
        %v311 = vld [vmem:[%s181 + $0x2a0] sm:$0xff]
        %v312 = vld [vmem:[%s181 + $0x2a8] sm:$0xff]
        %v313 = vld [vmem:[%s181 + $0x2b0] sm:$0xff]
        %v314 = vld [vmem:[%s181 + $0x2b8] sm:$0xff]
        %v315 = vld [vmem:[%s181 + $0x2c0] sm:$0xff]
        %v316 = vld [vmem:[%s181 + $0x2c8] sm:$0xff]
        %v317 = vld [vmem:[%s181 + $0x2d0] sm:$0xff]
        %v318 = vld [vmem:[%s181 + $0x2d8] sm:$0xff]
        %v319 = vld [vmem:[%s181 + $0x2e0] sm:$0xff]
        %v320 = vld [vmem:[%s181 + $0x2e8] sm:$0xff]
        %v321 = vld [vmem:[%s181 + $0x2f0] sm:$0xff]
        %v322 = vld [vmem:[%s181 + $0x2f8] sm:$0xff]
        %v323 = vld [vmem:[%s181 + $0x300] sm:$0xff]
        %v324 = vld [vmem:[%s181 + $0x308] sm:$0xff]
        %v325 = vld [vmem:[%s181 + $0x310] sm:$0xff]
        %v326 = vld [vmem:[%s181 + $0x318] sm:$0xff]
        %v327 = vld [vmem:[%s181 + $0x320] sm:$0xff]
        %v328 = vld [vmem:[%s181 + $0x328] sm:$0xff]
        %v329 = vld [vmem:[%s181 + $0x330] sm:$0xff]
        %v330 = vld [vmem:[%s181 + $0x338] sm:$0xff]
        %v331 = vld [vmem:[%s181 + $0x340] sm:$0xff]
        %v332 = vld [vmem:[%s181 + $0x348] sm:$0xff]
        %v333 = vld [vmem:[%s181 + $0x350] sm:$0xff]
        %v334 = vld [vmem:[%s181 + $0x358] sm:$0xff]
        %v335 = vld [vmem:[%s181 + $0x360] sm:$0xff]
        %v336 = vld [vmem:[%s181 + $0x368] sm:$0xff]
        %v337 = vld [vmem:[%s181 + $0x370] sm:$0xff]
        %v338 = vld [vmem:[%s181 + $0x378] sm:$0xff]
        %vm339 = vcmask 916480
        %v341 = vsel %vm339, %v226, 0
        %343 = vmatpush.msra.mxu0 0.0
        %344 = vmatpush.msra.mxu0 0.0
        %345 = vmatpush.msra.mxu0 %v331
        %346 = vmatpush.msra.mxu0 %v323
        %347 = vmatpush.msra.mxu0 %v315
        %348 = vmatpush.msra.mxu0 %v307
        %349 = vmatpush.msra.mxu0 %v299
        %350 = vmatpush.msra.mxu0 %v291
        %351 = vmatpush.msra.mxu0 %v283
        %352 = vmatpush.msra.mxu0 %v275
        %353 = vmatpush.msra.mxu0 %v267
        %354 = vmatpush.msra.mxu0 %v259
        %355 = vmatpush.msra.mxu0 %v251
        %356 = vmatpush.msra.mxu0 %v243
        %357 = vmatpush.msra.mxu0 %v235
        %358 = vmatpush.msra.mxu0 %v227
        %359 = vmatmul.f32.gmra.mxu0 %v341
        %v360 = vpop.f32.mrf.mxu0
        %v361 = vadd.f32 0.0, %v360
        %362 = vdwg.mxu0
        %363 = vmatpush.msra.mxu0 0.0
        %364 = vmatpush.msra.mxu0 0.0
        %365 = vmatpush.msra.mxu0 %v332
        %366 = vmatpush.msra.mxu0 %v324
        %367 = vmatpush.msra.mxu0 %v316
        %368 = vmatpush.msra.mxu0 %v308
        %369 = vmatpush.msra.mxu0 %v300
        %370 = vmatpush.msra.mxu0 %v292
        %371 = vmatpush.msra.mxu0 %v284
        %372 = vmatpush.msra.mxu0 %v276
        %373 = vmatpush.msra.mxu0 %v268
        %374 = vmatpush.msra.mxu0 %v260
        %375 = vmatpush.msra.mxu0 %v252
        %376 = vmatpush.msra.mxu0 %v244
        %377 = vmatpush.msra.mxu0 %v236
        %378 = vmatpush.msra.mxu0 %v228
        %379 = vmatmul.f32.gmra.mxu0 %v341
        %v380 = vpop.f32.mrf.mxu0
        %v381 = vadd.f32 0.0, %v380
        %382 = vdwg.mxu0
        %383 = vmatpush.msra.mxu0 0.0
        %384 = vmatpush.msra.mxu0 0.0
        %385 = vmatpush.msra.mxu0 %v333
        %386 = vmatpush.msra.mxu0 %v325
        %387 = vmatpush.msra.mxu0 %v317
        %388 = vmatpush.msra.mxu0 %v309
        %389 = vmatpush.msra.mxu0 %v301
        %390 = vmatpush.msra.mxu0 %v293
        %391 = vmatpush.msra.mxu0 %v285
        %392 = vmatpush.msra.mxu0 %v277
        %393 = vmatpush.msra.mxu0 %v269
        %394 = vmatpush.msra.mxu0 %v261
        %395 = vmatpush.msra.mxu0 %v253
        %396 = vmatpush.msra.mxu0 %v245
        %397 = vmatpush.msra.mxu0 %v237
        %398 = vmatpush.msra.mxu0 %v229
        %399 = vmatmul.f32.gmra.mxu0 %v341
        %v400 = vpop.f32.mrf.mxu0
        %v401 = vadd.f32 0.0, %v400
        %402 = vdwg.mxu0
        %403 = vmatpush.msra.mxu0 0.0
        %404 = vmatpush.msra.mxu0 0.0
        %405 = vmatpush.msra.mxu0 %v334
        %406 = vmatpush.msra.mxu0 %v326
        %407 = vmatpush.msra.mxu0 %v318
        %408 = vmatpush.msra.mxu0 %v310
        %409 = vmatpush.msra.mxu0 %v302
        %410 = vmatpush.msra.mxu0 %v294
        %411 = vmatpush.msra.mxu0 %v286
        %412 = vmatpush.msra.mxu0 %v278
        %413 = vmatpush.msra.mxu0 %v270
        %414 = vmatpush.msra.mxu0 %v262
        %415 = vmatpush.msra.mxu0 %v254
        %416 = vmatpush.msra.mxu0 %v246
        %417 = vmatpush.msra.mxu0 %v238
        %418 = vmatpush.msra.mxu0 %v230
        %419 = vmatmul.f32.gmra.mxu0 %v341
        %v420 = vpop.f32.mrf.mxu0
        %v421 = vadd.f32 0.0, %v420
        %422 = vdwg.mxu0
        %423 = vmatpush.msra.mxu0 0.0
        %424 = vmatpush.msra.mxu0 0.0
        %425 = vmatpush.msra.mxu0 %v335
        %426 = vmatpush.msra.mxu0 %v327
        %427 = vmatpush.msra.mxu0 %v319
        %428 = vmatpush.msra.mxu0 %v311
        %429 = vmatpush.msra.mxu0 %v303
        %430 = vmatpush.msra.mxu0 %v295
        %431 = vmatpush.msra.mxu0 %v287
        %432 = vmatpush.msra.mxu0 %v279
        %433 = vmatpush.msra.mxu0 %v271
        %434 = vmatpush.msra.mxu0 %v263
        %435 = vmatpush.msra.mxu0 %v255
        %436 = vmatpush.msra.mxu0 %v247
        %437 = vmatpush.msra.mxu0 %v239
        %438 = vmatpush.msra.mxu0 %v231
        %439 = vmatmul.f32.gmra.mxu0 %v341
        %v440 = vpop.f32.mrf.mxu0
        %v441 = vadd.f32 0.0, %v440
        %442 = vdwg.mxu0
        %443 = vmatpush.msra.mxu0 0.0
        %444 = vmatpush.msra.mxu0 0.0
        %445 = vmatpush.msra.mxu0 %v336
        %446 = vmatpush.msra.mxu0 %v328
        %447 = vmatpush.msra.mxu0 %v320
        %448 = vmatpush.msra.mxu0 %v312
        %449 = vmatpush.msra.mxu0 %v304
        %450 = vmatpush.msra.mxu0 %v296
        %451 = vmatpush.msra.mxu0 %v288
        %452 = vmatpush.msra.mxu0 %v280
        %453 = vmatpush.msra.mxu0 %v272
        %454 = vmatpush.msra.mxu0 %v264
        %455 = vmatpush.msra.mxu0 %v256
        %456 = vmatpush.msra.mxu0 %v248
        %457 = vmatpush.msra.mxu0 %v240
        %458 = vmatpush.msra.mxu0 %v232
        %459 = vmatmul.f32.gmra.mxu0 %v341
        %v460 = vpop.f32.mrf.mxu0
        %v461 = vadd.f32 0.0, %v460
        %462 = vdwg.mxu0
        %463 = vmatpush.msra.mxu0 0.0
        %464 = vmatpush.msra.mxu0 0.0
        %465 = vmatpush.msra.mxu0 %v337
        %466 = vmatpush.msra.mxu0 %v329
        %467 = vmatpush.msra.mxu0 %v321
        %468 = vmatpush.msra.mxu0 %v313
        %469 = vmatpush.msra.mxu0 %v305
        %470 = vmatpush.msra.mxu0 %v297
        %471 = vmatpush.msra.mxu0 %v289
        %472 = vmatpush.msra.mxu0 %v281
        %473 = vmatpush.msra.mxu0 %v273
        %474 = vmatpush.msra.mxu0 %v265
        %475 = vmatpush.msra.mxu0 %v257
        %476 = vmatpush.msra.mxu0 %v249
        %477 = vmatpush.msra.mxu0 %v241
        %478 = vmatpush.msra.mxu0 %v233
        %479 = vmatmul.f32.gmra.mxu0 %v341
        %v480 = vpop.f32.mrf.mxu0
        %v481 = vadd.f32 0.0, %v480
        %482 = vdwg.mxu0
        %483 = vmatpush.msra.mxu0 0.0
        %484 = vmatpush.msra.mxu0 0.0
        %485 = vmatpush.msra.mxu0 %v338
        %486 = vmatpush.msra.mxu0 %v330
        %487 = vmatpush.msra.mxu0 %v322
        %488 = vmatpush.msra.mxu0 %v314
        %489 = vmatpush.msra.mxu0 %v306
        %490 = vmatpush.msra.mxu0 %v298
        %491 = vmatpush.msra.mxu0 %v290
        %492 = vmatpush.msra.mxu0 %v282
        %493 = vmatpush.msra.mxu0 %v274
        %494 = vmatpush.msra.mxu0 %v266
        %495 = vmatpush.msra.mxu0 %v258
        %496 = vmatpush.msra.mxu0 %v250
        %497 = vmatpush.msra.mxu0 %v242
        %498 = vmatpush.msra.mxu0 %v234
        %499 = vmatmul.f32.gmra.mxu0 %v341
        %v500 = vpop.f32.mrf.mxu0
        %v501 = vadd.f32 0.0, %v500
        %502 = vdwg.mxu0
        %v503 = vadd.f32 %v218, %v361
        %v504 = vadd.f32 %v219, %v381
        %v505 = vadd.f32 %v220, %v401
        %v506 = vadd.f32 %v221, %v421
        %v507 = vadd.f32 %v222, %v441
        %v508 = vadd.f32 %v223, %v461
        %v509 = vadd.f32 %v224, %v481
        %v510 = vadd.f32 %v225, %v501
        %511 = vst [vmem:[%s202] sm:$0xff] %v503
        %512 = vst [vmem:[%s202 + $0x8] sm:$0xff] %v504
        %513 = vst [vmem:[%s202 + $0x10] sm:$0xff] %v505
        %514 = vst [vmem:[%s202 + $0x18] sm:$0xff] %v506
        %515 = vst [vmem:[%s202 + $0x20] sm:$0xff] %v507
        %516 = vst [vmem:[%s202 + $0x28] sm:$0xff] %v508
        %517 = vst [vmem:[%s202 + $0x30] sm:$0xff] %v509
        %518 = vst [vmem:[%s202 + $0x38] sm:$0xff] %v510
        %s519 = sand.u32 %s94, 1
        %s520 = scalar_lea.sflag [#allocation4], %s519
        %s521 = sand.u32 %s94, 1
        %s522 = smul.addr %s521, 64
        %s523 = scalar_lea.vmem [#allocation7], %s522
        // Predicated region
        $region41: #{tpu_custom_call.1} parent=27 // pred_check
          %p524 = pneg %p104
        $region42: #{tpu_custom_call.1} parent=27 // pred_check_branch
          %526 = sbr.rel (%p524) target = $region44
        $region43: #{tpu_custom_call.1} parent=27 // pred_region
          %s527 = smul.u32 8, %s24
          %529 = vsyncadd %s520, 0
          %s530 = smul.addr %s527, 8
          %s531 = scalar_lea.hbm %s2, %s530
          %s533 = sshll.u32 %s523, 4
          %s534 = int_to_ptr.vmem [resolvable:$true] %s533
          %s535 = sshll.u32 %s531, 4
          %s536 = int_to_ptr.hbm [resolvable:$true] %s535
          %538 = dma.vmem_to_hbm [thread:$0]  %s534, 1024, %s536, %s520
        $region44: #{tpu_custom_call.1} parent=27 // pred_fallthru
          _
      $region28: #{tpu_custom_call.1} parent=5 // pred_fallthru
        _
      %p539 = scmp.le.s32.totalorder 2, %s15
      // Predicated region
      $region45: #{tpu_custom_call.1} parent=5 // pred_check
        %p540 = pneg %p539
      $region46: #{tpu_custom_call.1} parent=5 // pred_check_branch
        %542 = sbr.rel (%p540) target = $region48
      $region47: #{tpu_custom_call.1} parent=5 // pred_region
        %s543 = ssub.s32 %s15, 2
        // Predicated region
        $region49: #{tpu_custom_call.1} parent=47 // pred_check
          %p544 = pneg %p110
        $region50: #{tpu_custom_call.1} parent=47 // pred_check_branch
          %546 = sbr.rel (%p544) target = $region52
        $region51: #{tpu_custom_call.1} parent=47 // pred_region
          %s547 = sand.u32 %s95, 1
          %s548 = scalar_lea.sflag [#allocation4], %s547
          %s549 = sand.u32 %s95, 1
          %s550 = smul.addr %s549, 64
          %s551 = scalar_lea.vmem [#allocation7], %s550
          %553 = dma.done %s548, 1024
        $region52: #{tpu_custom_call.1} parent=47 // pred_fallthru
          _
      $region48: #{tpu_custom_call.1} parent=5 // pred_fallthru
        _
    $region6: #{tpu_custom_call.1} parent=1 // loop_footer
      %s19 = sadd.s32 1, %s15
    $region7: #{tpu_custom_call.1} parent=1 // loop_footer_branch
      %14 = sbr.rel target = $region3
    $region8: #{tpu_custom_call.1} parent=1 // loop_exit
      _
    %554 = vsyncpa [#allocation3], 1
    %s555 = scalar_lea.sflag [#allocation3], 1
    %556 = vsyncpa %s555, 1
    %557 = vsyncpa [#allocation6], 1
    %s558 = scalar_lea.sflag [#allocation6], 1
    %559 = vsyncpa %s558, 1
    %560 = vsyncpa [#allocation4], 1
    %s561 = scalar_lea.sflag [#allocation4], 1
    %562 = vsyncpa %s561, 1

</llo_original>
